<compile_context>
chip_gen: v7x
topology: tpu7x:2x2x1
jax: 0.10.0
libtpu: 0.0.40
codegen_flags: <defaults>
</compile_context>

<pallas_src>
import jax
import jax.numpy as jnp
from jax.experimental import pallas as pl
from jax.experimental.pallas import tpu as pltpu


def _normalize_kernel(img_ref, mean_ref, inv_std_ref, out_ref):
    # img_ref / out_ref : (RB, LB) tile of the flattened image
    # mean_ref / inv_std_ref : (RB, 1) f32, broadcast across lanes
    x = img_ref[...].astype(jnp.float32)
    out_ref[...] = ((x - mean_ref[...]) * inv_std_ref[...]).astype(out_ref.dtype)


def normalize(img, mean, std, *,
              max_block_bytes=4 * 1024 * 1024,
              min_pallas_bytes=1 * 1024 * 1024,
              force_pallas=False):
    """(img - mean[None, :, None, None]) / std[None, :, None, None], NCHW img."""
    N, C, H, W = img.shape
    R, HW = N * C, H * W

    in_bytes = jnp.dtype(img.dtype).itemsize
    # PyTorch Normalize requires float input; promote integer images to f32
    # instead of silently truncating the result back to int.
    out_dtype = img.dtype if jnp.issubdtype(img.dtype, jnp.floating) else jnp.float32
    out_bytes = jnp.dtype(out_dtype).itemsize

    mean_f = mean.astype(jnp.float32)
    inv_f = 1.0 / std.astype(jnp.float32)   # exact f32 reciprocal, computed once

    # ---------- Small-input fast path: skip pallas_call entirely. ----------
    if (not force_pallas) and R * HW * in_bytes < min_pallas_bytes:
        out = (img.astype(jnp.float32) - mean_f[None, :, None, None]) \
              * inv_f[None, :, None, None]
        return out.astype(out_dtype)

    # Flatten to (rows, lanes): row = n*C + c, lanes = the H*W plane.
    # Keep the image in its original dtype for the HBM->VMEM DMA; upcast in-kernel.
    x = img.reshape(R, HW)

    # Per-row channel constants, (R, 1) so they broadcast across lanes in-kernel.
    mean_rows = jnp.tile(mean_f, N).reshape(R, 1)
    inv_rows = jnp.tile(inv_f, N).reshape(R, 1)

    # ---------- Tile selection: big, lane-dense, dtype-aware blocks. ----------
    # Native sublane tile for the image dtype (f32:8, bf16:16, int8/fp8:32).
    sublane = {4: 8, 2: 16, 1: 32}.get(in_bytes, 8)
    # Budget counts both the input and output bytes of one grid step.
    max_block_elems = max(128, max_block_bytes // (in_bytes + out_bytes))

    if HW <= max_block_elems:
        lb = HW                                   # full lane dim (always legal)
    else:
        lb = (max_block_elems // 128) * 128       # lane-dense multiple of 128

    rb = max(1, max_block_elems // lb)
    if rb >= R:
        rb = R                                    # full row dim (always legal)
    else:
        rb = min(max(sublane, (rb // sublane) * sublane), R)

    # v7x megacore: make sure there are >= 2 grid steps along the (parallel)
    # row axis when the budget would otherwise collapse the grid to one step,
    # so both TensorCores get disjoint, contiguous DMA streams.
    if pl.cdiv(R, rb) * pl.cdiv(HW, lb) < 2 and R >= 2 * sublane:
        rb = pl.cdiv(pl.cdiv(R, 2), sublane) * sublane

    grid = (pl.cdiv(R, rb), pl.cdiv(HW, lb))      # lane axis innermost

    cost = pl.CostEstimate(
        flops=2 * R * HW,
        bytes_accessed=R * HW * (in_bytes + out_bytes) + 2 * R * 4,
        transcendentals=0,
    )

    out = pl.pallas_call(
        _normalize_kernel,
        out_shape=jax.ShapeDtypeStruct((R, HW), out_dtype),
        grid=grid,
        in_specs=[
            pl.BlockSpec((rb, lb), lambda r, l: (r, l)),
            pl.BlockSpec((rb, 1), lambda r, l: (r, 0)),
            pl.BlockSpec((rb, 1), lambda r, l: (r, 0)),
        ],
        out_specs=pl.BlockSpec((rb, lb), lambda r, l: (r, l)),
        compiler_params=pltpu.CompilerParams(
            dimension_semantics=("parallel", "parallel"),
            vmem_limit_bytes=32 * 1024 * 1024,
        ),
        cost_estimate=cost,
    )(x, mean_rows, inv_rows)

    return out.reshape(N, C, H, W)


if __name__ == "__main__":
    key = jax.random.PRNGKey(0)
    k_img, k_mean, k_std = jax.random.split(key, 3)

    N, C, H, W = 2, 4, 16, 16
    img = jax.random.normal(k_img, (N, C, H, W), dtype=jnp.float32)

    # Deterministic per-channel mean / std (std strictly positive), analogous
    # to the constants passed to Normalize.__init__.
    mean = jax.random.uniform(k_mean, (C,), dtype=jnp.float32, minval=0.2, maxval=0.8)
    std = jax.random.uniform(k_std, (C,), dtype=jnp.float32, minval=0.1, maxval=0.5)

    # Force the Pallas path so the kernel is actually compiled & executed
    # (the demo image is only 8 KiB, so the default would take the fast path).
    out = normalize(img, mean, std, force_pallas=True)
    out = jax.block_until_ready(out)

    # Reference (plain JAX, mirrors the PyTorch broadcasting semantics).
    ref = (img - mean[None, :, None, None]) / std[None, :, None, None]
    assert out.shape == img.shape and out.dtype == img.dtype
    assert jnp.allclose(out, ref, atol=1e-6, rtol=1e-5)

    # Also sanity-check the small-input fast path agrees with the kernel.
    fast = jax.block_until_ready(normalize(img, mean, std))
    assert jnp.allclose(fast, ref, atol=1e-6, rtol=1e-5)

    print("KERNEL_OK")
</pallas_src>

<mosaic_0001>
module attributes {stable_mosaic.version = 11 : i64} {
  func.func @_normalize_kernel(%arg0: i32, %arg1: i32, %arg2: memref<8x256xf32, #tpu.memory_space<vmem>>, %arg3: memref<8x1xf32, #tpu.memory_space<vmem>>, %arg4: memref<8x1xf32, #tpu.memory_space<vmem>>, %arg5: memref<8x256xf32, #tpu.memory_space<vmem>>) attributes {dimension_semantics = [#tpu.dimension_semantics<parallel>, #tpu.dimension_semantics<parallel>], iteration_bounds = array<i64: 1, 1>, scalar_prefetch = 0 : i64, scratch_operands = 0 : i64, tpu.core_type = #tpu.core_type<tc>, window_params = [{transform_indices = @transform_0, window_bounds = array<i64: 8, 256>}, {transform_indices = @transform_1, window_bounds = array<i64: 8, 1>}, {transform_indices = @transform_2, window_bounds = array<i64: 8, 1>}, {transform_indices = @transform_3, window_bounds = array<i64: 8, 256>}]} {
    %c0 = arith.constant 0 : index
    %c0_0 = arith.constant 0 : index
    %0 = vector.load %arg2[%c0, %c0_0] : memref<8x256xf32, #tpu.memory_space<vmem>>, vector<8x256xf32>
    %c0_1 = arith.constant 0 : index
    %c0_2 = arith.constant 0 : index
    %1 = vector.load %arg3[%c0_1, %c0_2] : memref<8x1xf32, #tpu.memory_space<vmem>>, vector<8x1xf32>
    %2 = vector.broadcast %1 : vector<8x1xf32> to vector<8x256xf32>
    %3 = arith.subf %0, %2 : vector<8x256xf32>
    %c0_3 = arith.constant 0 : index
    %c0_4 = arith.constant 0 : index
    %4 = vector.load %arg4[%c0_3, %c0_4] : memref<8x1xf32, #tpu.memory_space<vmem>>, vector<8x1xf32>
    %5 = vector.broadcast %4 : vector<8x1xf32> to vector<8x256xf32>
    %6 = arith.mulf %3, %5 : vector<8x256xf32>
    %c0_5 = arith.constant 0 : index
    %c0_6 = arith.constant 0 : index
    %7 = vector.load %arg5[%c0_5, %c0_6] : memref<8x256xf32, #tpu.memory_space<vmem>>, vector<8x256xf32>
    tpu.vector_store %arg5[%c0_5, %c0_6], %6 {strides = array<i32>} : memref<8x256xf32, #tpu.memory_space<vmem>>, vector<8x256xf32>,
    return
  }
  func.func @transform_0(%arg0: i32, %arg1: i32) -> (i32, i32) {
    %c0_i32 = arith.constant 0 : i32
    return %arg0, %arg1 : i32, i32
  }
  func.func @transform_1(%arg0: i32, %arg1: i32) -> (i32, i32) {
    %c0_i32 = arith.constant 0 : i32
    %c0_i32_0 = arith.constant 0 : i32
    return %arg0, %c0_i32 : i32, i32
  }
  func.func @transform_2(%arg0: i32, %arg1: i32) -> (i32, i32) {
    %c0_i32 = arith.constant 0 : i32
    %c0_i32_0 = arith.constant 0 : i32
    return %arg0, %c0_i32 : i32, i32
  }
  func.func @transform_3(%arg0: i32, %arg1: i32) -> (i32, i32) {
    %c0_i32 = arith.constant 0 : i32
    return %arg0, %arg1 : i32, i32
  }
}

</mosaic_0001>

<llo_original>
// kernel: tpu_custom_call.1
$region0: #{tpu_custom_call.1}
  #allocation0 [shape = 'u32[]', space=smem, size = 0x4, offset = 0x4, fixed_abs, tag = 'smem constant byte address 0x4 - core index']
  #allocation1 [shape = 'u32[144,128]{1,0:T(1,128)}', space=vmem, size = 0x12000, scoped, tag = 'internal scratch']
  %s0 = inlined_call_operand.vmem [shape: f32[8,256], index: 0, kind: input, shape index: {}]
  %s1 = inlined_call_operand.vmem [shape: f32[8,1], index: 1, kind: input, shape index: {}]
  %s2 = inlined_call_operand.vmem [shape: f32[8,1], index: 2, kind: input, shape index: {}]
  %s3 = inlined_call_operand.hbm [shape: f32[8,256], index: 3, kind: output, shape index: {}]
  %s4 = sld [smem:[#allocation0]]
  $region22: #{tpu_custom_call.1} parent=0
    _
  %s6 = ssub.s32 1, %s4
  %s7 = scalar_select 0, %s6, %s4
  $region1: #{tpu_custom_call.1} parent=0
    #allocation2 [shape = 'u8[8192]{0}', space=vmem, size = 0x2000, scoped, tag = 'output window, operand 0, single buffered']
    #allocation3 [shape = 's32[1]{0}', space=sflag, size = 0x4, scoped, tag = 'scoped memory for tpu_custom_call.1']
    %8 = vsyncpa [#allocation3], 0
    // Predicated region
    $region2: #{tpu_custom_call.1} parent=1 // pred_check
      _
    $region3: #{tpu_custom_call.1} parent=1 // pred_check_branch
      %10 = sbr.rel (0) target = $region5
    $region4: #{tpu_custom_call.1} parent=1 // pred_region
      _
    $region5: #{tpu_custom_call.1} parent=1 // pred_fallthru
      _
    // Predicated region
    $region6: #{tpu_custom_call.1} parent=1 // pred_check
      _
    $region7: #{tpu_custom_call.1} parent=1 // pred_check_branch
      %12 = sbr.rel (0) target = $region9
    $region8: #{tpu_custom_call.1} parent=1 // pred_region
      _
    $region9: #{tpu_custom_call.1} parent=1 // pred_fallthru
      _
    // Predicated region
    $region10: #{tpu_custom_call.1} parent=1 // pred_check
      _
    $region11: #{tpu_custom_call.1} parent=1 // pred_check_branch
      %14 = sbr.rel (0) target = $region13
    $region12: #{tpu_custom_call.1} parent=1 // pred_region
      _
    $region13: #{tpu_custom_call.1} parent=1 // pred_fallthru
      _
    %v15 = vld [vmem:[%s0] sm:$0xff]
    %v16 = vld [vmem:[%s0 + $0x8] sm:$0xff]
    %v17 = vld [vmem:[%s1] sm:$0xff]
    %19 = vset.pattern.permute.xlu0 0
    %20 = vperm.xlu0 %19, %v17
    %v21 = vpop.permute.xlu0 %20
    %v23 = vsub.f32 %v15, %v21
    %v24 = vsub.f32 %v16, %v21
    %v25 = vld [vmem:[%s2] sm:$0xff]
    %27 = vset.pattern.permute.xlu0 0
    %28 = vperm.xlu0 %27, %v25
    %v29 = vpop.permute.xlu0 %28
    %v31 = vmul.f32 %v23, %v29
    %v32 = vmul.f32 %v24, %v29
    %33 = vst [vmem:[#allocation2] sm:$0xff] %v31
    %34 = vst [vmem:[#allocation2 + $0x8] sm:$0xff] %v32
    // Predicated region
    $region14: #{tpu_custom_call.1} parent=1 // pred_check
      _
    $region15: #{tpu_custom_call.1} parent=1 // pred_check_branch
      %36 = sbr.rel (0) target = $region17
    $region16: #{tpu_custom_call.1} parent=1 // pred_region
      %s38 = ssub.s32 256, 256
      %39 = vsyncadd [#allocation3], %s38
      %s41 = sshll.u32 [#allocation2], 4
      %s42 = int_to_ptr.vmem [resolvable:$true] %s41
      %44 = dma.vmem_to_hbm [thread:$0]  %s42, 256, %s3, [#allocation3]
    $region17: #{tpu_custom_call.1} parent=1 // pred_fallthru
      _
    // Predicated region
    $region18: #{tpu_custom_call.1} parent=1 // pred_check
      _
    $region19: #{tpu_custom_call.1} parent=1 // pred_check_branch
      %46 = sbr.rel (0) target = $region21
    $region20: #{tpu_custom_call.1} parent=1 // pred_region
      %47 = dma.done [#allocation3], 256
    $region21: #{tpu_custom_call.1} parent=1 // pred_fallthru
      _
    %48 = vsyncpa [#allocation3], 1

</llo_original>
